<compile_context>
chip_gen: v6e
topology: v6e:2x2x1
jax: 0.10.0
libtpu: 0.0.40
codegen_flags: <defaults>
</compile_context>

<pallas_src>
import jax
import jax.numpy as jnp
from jax.experimental import pallas as pl
from jax.experimental.pallas import tpu as pltpu


def _round_up(a, b):
    return (a + b - 1) // b * b


def se_mlp_kernel(x_ref, w1_ref, b1_ref, w2_ref, b2_ref, o_ref):
    # Channels-on-sublanes / pixels-on-lanes orientation:
    #   x_ref:  (C_in, bm)           w1_ref: (C_mid_pad, C_in)   b1_ref: (C_mid_pad, 1)
    #   w2_ref: (C_out, C_mid_pad)   b2_ref: (C_out, 1)          o_ref:  (C_out, bm)
    x = x_ref[...]
    # conv2d116 (1x1): W1 @ x with f32 accumulation on the MXU.
    h = jnp.dot(w1_ref[...], x, preferred_element_type=jnp.float32) + b1_ref[...]
    # relu91 (kept in f32 on the VPU; v5e has no bf16 VALU).
    h = jnp.maximum(h, 0.0)
    # conv2d117 (1x1): W2 @ h.
    y = jnp.dot(w2_ref[...], h.astype(w2_ref.dtype),
                preferred_element_type=jnp.float32) + b2_ref[...]
    o_ref[...] = y.astype(o_ref.dtype)


def prepare_weights(w1, b1, w2, b2, *, compute_dtype=jnp.float32):
    """Reshape 1x1-conv weights to matmul form and zero-pad C_mid -> multiple of 128.
    Call once and pass the result as `prepared=` to avoid rebuilding padded copies
    (and their HBM traffic) on every invocation."""
    C_mid, C_in = w1.shape[0], w1.shape[1]
    C_out = w2.shape[0]
    C_mid_pad = _round_up(C_mid, 128)
    cdt = jnp.dtype(compute_dtype)
    w1p = jnp.zeros((C_mid_pad, C_in), jnp.float32).at[:C_mid, :].set(
        w1.reshape(C_mid, C_in)).astype(cdt)                      # (128, 336)
    w2p = jnp.zeros((C_out, C_mid_pad), jnp.float32).at[:, :C_mid].set(
        w2.reshape(C_out, C_mid)).astype(cdt)                     # (336, 128)
    b1p = jnp.zeros((C_mid_pad, 1), jnp.float32).at[:C_mid, 0].set(
        b1.astype(jnp.float32))                                   # (128, 1)
    b2p = b2.reshape(C_out, 1).astype(jnp.float32)                # (336, 1)
    return w1p, b1p, w2p, b2p


def conv_relu_conv(x_nchw, w1, b1, w2, b2, *, block_m=2048, compute_dtype=None,
                   out_dtype=None, min_pallas_rows=512, prepared=None):
    """x_nchw: (N, C_in, H, W); w1: (C_mid, C_in, 1, 1); b1: (C_mid,);
       w2: (C_out, C_mid, 1, 1); b2: (C_out,). Returns (N, C_out, H, W)."""
    N, C_in, H, W = x_nchw.shape
    C_mid = w1.shape[0]
    C_out = w2.shape[0]
    HW = H * W
    out_dt = jnp.dtype(out_dtype) if out_dtype is not None else x_nchw.dtype

    # ---- tiny-M fast path: launch + DMA fixed cost dominates (e.g. (1,336,1,1));
    # let XLA fuse the two matmuls + ReLU instead of paying a pallas_call.
    if N * HW < min_pallas_rows:
        x3d = x_nchw.reshape(N, C_in, HW)
        h = jnp.einsum("oc,nci->noi", w1.reshape(C_mid, C_in), x3d,
                       preferred_element_type=jnp.float32) + b1[None, :, None]
        h = jnp.maximum(h, 0.0)
        y = jnp.einsum("oc,nci->noi", w2.reshape(C_out, C_mid), h,
                       preferred_element_type=jnp.float32) + b2[None, :, None]
        return y.reshape(N, C_out, H, W).astype(out_dt)

    # ---- Pallas path: keep NCHW order, channels on sublanes, pixels on lanes.
    cdt = jnp.dtype(compute_dtype) if compute_dtype is not None else x_nchw.dtype
    x3d = x_nchw.reshape(N, C_in, HW).astype(cdt)        # pure reshape, no transpose

    if prepared is None:
        prepared = prepare_weights(w1, b1, w2, b2, compute_dtype=cdt)
    w1p, b1p, w2p, b2p = prepared
    C_mid_pad = w1p.shape[0]

    # ---- lane-tile size: multiple of 128 (unmasked stores), no activation padding
    # (grid = cdiv, Pallas masks the partial edge block), and >= 2 grid steps when
    # N == 1 so the "parallel" axis can shard across v7x's two TensorCores.
    bm_cap = max(128, (block_m // 128) * 128)            # clamp caller's block_m
    if HW <= 256:
        bm = HW                                          # single full-extent lane block
    else:
        want = HW if N >= 2 else -(-HW // 2)             # ceil(HW/2) if N == 1
        bm = min(bm_cap, _round_up(want, 128))
        if bm >= HW:
            bm = HW                                      # full extent is always layout-legal
    grid = (N, pl.cdiv(HW, bm))

    out3d = pl.pallas_call(
        se_mlp_kernel,
        out_shape=jax.ShapeDtypeStruct((N, C_out, HW), out_dt),
        grid=grid,
        in_specs=[
            pl.BlockSpec((None, C_in, bm), lambda n, i: (n, 0, i)),     # x: streamed tiles
            pl.BlockSpec((C_mid_pad, C_in), lambda n, i: (0, 0)),       # W1: VMEM-resident
            pl.BlockSpec((C_mid_pad, 1), lambda n, i: (0, 0)),          # b1: VMEM-resident
            pl.BlockSpec((C_out, C_mid_pad), lambda n, i: (0, 0)),      # W2: VMEM-resident
            pl.BlockSpec((C_out, 1), lambda n, i: (0, 0)),              # b2: VMEM-resident
        ],
        out_specs=pl.BlockSpec((None, C_out, bm), lambda n, i: (n, 0, i)),
        compiler_params=pltpu.CompilerParams(
            dimension_semantics=("parallel", "parallel"),
        ),
    )(x3d, w1p, b1p, w2p, b2p)

    return out3d.reshape(N, C_out, H, W)


if __name__ == "__main__":
    key = jax.random.PRNGKey(0)
    kx, k1, kb1, k2, kb2 = jax.random.split(key, 5)

    # Shapes implied by the module: input (1, 336, 1, 1), conv1 336->84, conv2 84->336.
    N, C_in, H, W = 1, 336, 1, 1
    C_mid, C_out = 84, 336

    x = jax.random.normal(kx, (N, C_in, H, W), dtype=jnp.float32)

    # Deterministic parameter init (PyTorch-like uniform fan-in scaling).
    bound1 = 1.0 / (C_in ** 0.5)
    w1 = jax.random.uniform(k1, (C_mid, C_in, 1, 1), jnp.float32, -bound1, bound1)
    b1 = jax.random.uniform(kb1, (C_mid,), jnp.float32, -bound1, bound1)
    bound2 = 1.0 / (C_mid ** 0.5)
    w2 = jax.random.uniform(k2, (C_out, C_mid, 1, 1), jnp.float32, -bound2, bound2)
    b2 = jax.random.uniform(kb2, (C_out,), jnp.float32, -bound2, bound2)

    def ref_fn(xin):
        n, _, h, w = xin.shape
        x2d = xin.reshape(n, C_in, h * w)
        r = jnp.maximum(jnp.einsum("oc,nci->noi", w1.reshape(C_mid, C_in), x2d)
                        + b1[None, :, None], 0.0)
        r = jnp.einsum("oc,nci->noi", w2.reshape(C_out, C_mid), r) + b2[None, :, None]
        return r.reshape(n, C_out, h, w)

    # --- module-spec shape (1, 336, 1, 1): tiny-M fast path (no Pallas launch) ---
    out = jax.block_until_ready(conv_relu_conv(x, w1, b1, w2, b2))
    assert out.shape == (N, C_out, H, W)
    assert jnp.allclose(out, ref_fn(x), atol=1e-5, rtol=1e-5)

    # --- same shape forced through the Pallas kernel (min_pallas_rows=0) ---
    out_p = jax.block_until_ready(conv_relu_conv(x, w1, b1, w2, b2, min_pallas_rows=0))
    assert jnp.allclose(out_p, ref_fn(x), atol=1e-5, rtol=1e-5)

    # --- larger spatial shape: tiled Pallas grid path, lane-dense (256-wide) tiles ---
    xb = jax.random.normal(kx, (2, C_in, 16, 16), dtype=jnp.float32)
    outb = jax.block_until_ready(conv_relu_conv(xb, w1, b1, w2, b2))
    refb = ref_fn(xb)
    assert jnp.allclose(outb, refb, atol=1e-4, rtol=1e-4)

    # --- odd spatial size (HW=400): exercises the partial edge block, >=2 grid steps ---
    xc = jax.random.normal(kx, (1, C_in, 20, 20), dtype=jnp.float32)
    outc = jax.block_until_ready(
        conv_relu_conv(xc, w1, b1, w2, b2, block_m=256, min_pallas_rows=0))
    assert jnp.allclose(outc, ref_fn(xc), atol=1e-4, rtol=1e-4)

    # --- bf16 streaming path (f32 MXU accumulation), loose tolerance ---
    outbf = jax.block_until_ready(
        conv_relu_conv(xb, w1, b1, w2, b2, compute_dtype=jnp.bfloat16))
    assert jnp.allclose(outbf, refb, atol=1e-1, rtol=1e-1)

    print("KERNEL_OK")
</pallas_src>

<mosaic_0001>
module attributes {stable_mosaic.version = 11 : i64} {
  func.func @se_mlp_kernel(%arg0: i32, %arg1: i32, %arg2: memref<1x336x1xf32, #tpu.memory_space<vmem>>, %arg3: memref<128x336xf32, #tpu.memory_space<vmem>>, %arg4: memref<128x1xf32, #tpu.memory_space<vmem>>, %arg5: memref<336x128xf32, #tpu.memory_space<vmem>>, %arg6: memref<336x1xf32, #tpu.memory_space<vmem>>, %arg7: memref<1x336x1xf32, #tpu.memory_space<vmem>>) attributes {dimension_semantics = [#tpu.dimension_semantics<parallel>, #tpu.dimension_semantics<parallel>], iteration_bounds = array<i64: 1, 1>, scalar_prefetch = 0 : i64, scratch_operands = 0 : i64, tpu.core_type = #tpu.core_type<tc>, window_params = [{transform_indices = @transform_0, window_bounds = array<i64: 1, 336, 1>}, {pipeline_mode = #tpu.pipeline_mode<synchronous>, transform_indices = @transform_1, window_bounds = array<i64: 128, 336>}, {pipeline_mode = #tpu.pipeline_mode<synchronous>, transform_indices = @transform_2, window_bounds = array<i64: 128, 1>}, {pipeline_mode = #tpu.pipeline_mode<synchronous>, transform_indices = @transform_3, window_bounds = array<i64: 336, 128>}, {pipeline_mode = #tpu.pipeline_mode<synchronous>, transform_indices = @transform_4, window_bounds = array<i64: 336, 1>}, {transform_indices = @transform_5, window_bounds = array<i64: 1, 336, 1>}]} {
    %c0 = arith.constant 0 : index
    %c0_0 = arith.constant 0 : index
    %c0_1 = arith.constant 0 : index
    %0 = vector.load %arg2[%c0, %c0_0, %c0_1] : memref<1x336x1xf32, #tpu.memory_space<vmem>>, vector<1x336x1xf32>
    %1 = vector.shape_cast %0 : vector<1x336x1xf32> to vector<336x1xf32>
    %c0_2 = arith.constant 0 : index
    %c0_3 = arith.constant 0 : index
    %2 = vector.load %arg3[%c0_2, %c0_3] : memref<128x336xf32, #tpu.memory_space<vmem>>, vector<128x336xf32>
    %cst = arith.constant dense<0.000000e+00> : vector<128x1xf32>
    %3 = tpu.matmul %2, %1, %cst {dimension_numbers = #tpu.dot_dimension_numbers<[1], [0], [0], [1], [0, 0, 1, 1], [], []>} : vector<128x336xf32>, vector<336x1xf32>, vector<128x1xf32> -> vector<128x1xf32>
    %c0_4 = arith.constant 0 : index
    %c0_5 = arith.constant 0 : index
    %4 = vector.load %arg4[%c0_4, %c0_5] : memref<128x1xf32, #tpu.memory_space<vmem>>, vector<128x1xf32>
    %5 = arith.addf %3, %4 : vector<128x1xf32>
    %cst_6 = arith.constant 0.000000e+00 : f32
    %6 = vector.broadcast %cst_6 : f32 to vector<128x1xf32>
    %7 = arith.maximumf %5, %6 : vector<128x1xf32>
    %c0_7 = arith.constant 0 : index
    %c0_8 = arith.constant 0 : index
    %8 = vector.load %arg5[%c0_7, %c0_8] : memref<336x128xf32, #tpu.memory_space<vmem>>, vector<336x128xf32>
    %cst_9 = arith.constant dense<0.000000e+00> : vector<336x1xf32>
    %9 = tpu.matmul %8, %7, %cst_9 {dimension_numbers = #tpu.dot_dimension_numbers<[1], [0], [0], [1], [0, 0, 1, 1], [], []>} : vector<336x128xf32>, vector<128x1xf32>, vector<336x1xf32> -> vector<336x1xf32>
    %c0_10 = arith.constant 0 : index
    %c0_11 = arith.constant 0 : index
    %10 = vector.load %arg6[%c0_10, %c0_11] : memref<336x1xf32, #tpu.memory_space<vmem>>, vector<336x1xf32>
    %11 = arith.addf %9, %10 : vector<336x1xf32>
    %c0_12 = arith.constant 0 : index
    %c0_13 = arith.constant 0 : index
    %c0_14 = arith.constant 0 : index
    %12 = vector.load %arg7[%c0_12, %c0_13, %c0_14] : memref<1x336x1xf32, #tpu.memory_space<vmem>>, vector<1x336x1xf32>
    %13 = vector.shape_cast %12 : vector<1x336x1xf32> to vector<336x1xf32>
    %14 = vector.shape_cast %11 : vector<336x1xf32> to vector<1x336x1xf32>
    tpu.vector_store %arg7[%c0_12, %c0_13, %c0_14], %14 {strides = array<i32>} : memref<1x336x1xf32, #tpu.memory_space<vmem>>, vector<1x336x1xf32>,
    return
  }
  func.func @transform_0(%arg0: i32, %arg1: i32) -> (i32, i32, i32) {
    %c0_i32 = arith.constant 0 : i32
    %c0_i32_0 = arith.constant 0 : i32
    return %arg0, %c0_i32, %arg1 : i32, i32, i32
  }
  func.func @transform_1(%arg0: i32, %arg1: i32) -> (i32, i32) {
    %c0_i32 = arith.constant 0 : i32
    %c0_i32_0 = arith.constant 0 : i32
    %c0_i32_1 = arith.constant 0 : i32
    return %c0_i32, %c0_i32_0 : i32, i32
  }
  func.func @transform_2(%arg0: i32, %arg1: i32) -> (i32, i32) {
    %c0_i32 = arith.constant 0 : i32
    %c0_i32_0 = arith.constant 0 : i32
    %c0_i32_1 = arith.constant 0 : i32
    return %c0_i32, %c0_i32_0 : i32, i32
  }
  func.func @transform_3(%arg0: i32, %arg1: i32) -> (i32, i32) {
    %c0_i32 = arith.constant 0 : i32
    %c0_i32_0 = arith.constant 0 : i32
    %c0_i32_1 = arith.constant 0 : i32
    return %c0_i32, %c0_i32_0 : i32, i32
  }
  func.func @transform_4(%arg0: i32, %arg1: i32) -> (i32, i32) {
    %c0_i32 = arith.constant 0 : i32
    %c0_i32_0 = arith.constant 0 : i32
    %c0_i32_1 = arith.constant 0 : i32
    return %c0_i32, %c0_i32_0 : i32, i32
  }
  func.func @transform_5(%arg0: i32, %arg1: i32) -> (i32, i32, i32) {
    %c0_i32 = arith.constant 0 : i32
    %c0_i32_0 = arith.constant 0 : i32
    return %arg0, %c0_i32, %arg1 : i32, i32, i32
  }
}

</mosaic_0001>

<llo_original>
// kernel: tpu_custom_call.1
$region0: #{tpu_custom_call.1}
  #allocation0 [shape = 'u32[]', space=smem, size = 0x4, offset = 0x4, fixed_abs, tag = 'smem constant byte address 0x4 - core index']
  #allocation1 [shape = 'u32[144,128]{1,0:T(1,128)}', space=vmem, size = 0x12000, scoped, tag = 'internal scratch']
  %s0 = inlined_call_operand.vmem [shape: f32[1,336,1], index: 0, kind: input, shape index: {}]
  %s1 = inlined_call_operand.vmem [shape: f32[128,336], index: 1, kind: input, shape index: {}]
  %s2 = inlined_call_operand.vmem [shape: f32[128,1], index: 2, kind: input, shape index: {}]
  %s3 = inlined_call_operand.vmem [shape: f32[336,128], index: 3, kind: input, shape index: {}]
  %s4 = inlined_call_operand.vmem [shape: f32[336,1], index: 4, kind: input, shape index: {}]
  %s5 = inlined_call_operand.vmem [shape: f32[1,336,1], index: 5, kind: output, shape index: {}]
  %s6 = sld [smem:[#allocation0]]
  $region30: #{tpu_custom_call.1} parent=0
    _
  %s8 = ssub.s32 1, %s6
  %s9 = scalar_select 0, %s8, %s6
  // Predicated region
  $region2: #{tpu_custom_call.1} parent=0 // pred_check
    _
  $region3: #{tpu_custom_call.1} parent=0 // pred_check_branch
    %11 = sbr.rel (0) target = $region5
  $region4: #{tpu_custom_call.1} parent=0 // pred_region
    _
  $region5: #{tpu_custom_call.1} parent=0 // pred_fallthru
    _
  // Predicated region
  $region6: #{tpu_custom_call.1} parent=0 // pred_check
    _
  $region7: #{tpu_custom_call.1} parent=0 // pred_check_branch
    %13 = sbr.rel (0) target = $region9
  $region8: #{tpu_custom_call.1} parent=0 // pred_region
    _
  $region9: #{tpu_custom_call.1} parent=0 // pred_fallthru
    _
  // Predicated region
  $region10: #{tpu_custom_call.1} parent=0 // pred_check
    _
  $region11: #{tpu_custom_call.1} parent=0 // pred_check_branch
    %15 = sbr.rel (0) target = $region13
  $region12: #{tpu_custom_call.1} parent=0 // pred_region
    _
  $region13: #{tpu_custom_call.1} parent=0 // pred_fallthru
    _
  // Predicated region
  $region14: #{tpu_custom_call.1} parent=0 // pred_check
    _
  $region15: #{tpu_custom_call.1} parent=0 // pred_check_branch
    %17 = sbr.rel (0) target = $region17
  $region16: #{tpu_custom_call.1} parent=0 // pred_region
    _
  $region17: #{tpu_custom_call.1} parent=0 // pred_fallthru
    _
  // Predicated region
  $region18: #{tpu_custom_call.1} parent=0 // pred_check
    _
  $region19: #{tpu_custom_call.1} parent=0 // pred_check_branch
    %19 = sbr.rel (0) target = $region21
  $region20: #{tpu_custom_call.1} parent=0 // pred_region
    _
  $region21: #{tpu_custom_call.1} parent=0 // pred_fallthru
    _
  %v20 = vld [vmem:[%s0] sm:$0xff]
  %v21 = vld [vmem:[%s0 + $0x8] sm:$0xff]
  %v22 = vld [vmem:[%s0 + $0x10] sm:$0xff]
  %v23 = vld [vmem:[%s0 + $0x18] sm:$0xff]
  %v24 = vld [vmem:[%s0 + $0x20] sm:$0xff]
  %v25 = vld [vmem:[%s0 + $0x28] sm:$0xff]
  %v26 = vld [vmem:[%s0 + $0x30] sm:$0xff]
  %v27 = vld [vmem:[%s0 + $0x38] sm:$0xff]
  %v28 = vld [vmem:[%s0 + $0x40] sm:$0xff]
  %v29 = vld [vmem:[%s0 + $0x48] sm:$0xff]
  %v30 = vld [vmem:[%s0 + $0x50] sm:$0xff]
  %v31 = vld [vmem:[%s0 + $0x58] sm:$0xff]
  %v32 = vld [vmem:[%s0 + $0x60] sm:$0xff]
  %v33 = vld [vmem:[%s0 + $0x68] sm:$0xff]
  %v34 = vld [vmem:[%s0 + $0x70] sm:$0xff]
  %v35 = vld [vmem:[%s0 + $0x78] sm:$0xff]
  %v36 = vld [vmem:[%s0 + $0x80] sm:$0xff]
  %v37 = vld [vmem:[%s0 + $0x88] sm:$0xff]
  %v38 = vld [vmem:[%s0 + $0x90] sm:$0xff]
  %v39 = vld [vmem:[%s0 + $0x98] sm:$0xff]
  %v40 = vld [vmem:[%s0 + $0xa0] sm:$0xff]
  %v41 = vld [vmem:[%s0 + $0xa8] sm:$0xff]
  %v42 = vld [vmem:[%s0 + $0xb0] sm:$0xff]
  %v43 = vld [vmem:[%s0 + $0xb8] sm:$0xff]
  %v44 = vld [vmem:[%s0 + $0xc0] sm:$0xff]
  %v45 = vld [vmem:[%s0 + $0xc8] sm:$0xff]
  %v46 = vld [vmem:[%s0 + $0xd0] sm:$0xff]
  %v47 = vld [vmem:[%s0 + $0xd8] sm:$0xff]
  %v48 = vld [vmem:[%s0 + $0xe0] sm:$0xff]
  %v49 = vld [vmem:[%s0 + $0xe8] sm:$0xff]
  %v50 = vld [vmem:[%s0 + $0xf0] sm:$0xff]
  %v51 = vld [vmem:[%s0 + $0xf8] sm:$0xff]
  %v52 = vld [vmem:[%s0 + $0x100] sm:$0xff]
  %v53 = vld [vmem:[%s0 + $0x108] sm:$0xff]
  %v54 = vld [vmem:[%s0 + $0x110] sm:$0xff]
  %v55 = vld [vmem:[%s0 + $0x118] sm:$0xff]
  %v56 = vld [vmem:[%s0 + $0x120] sm:$0xff]
  %v57 = vld [vmem:[%s0 + $0x128] sm:$0xff]
  %v58 = vld [vmem:[%s0 + $0x130] sm:$0xff]
  %v59 = vld [vmem:[%s0 + $0x138] sm:$0xff]
  %v60 = vld [vmem:[%s0 + $0x140] sm:$0xff]
  %v61 = vld [vmem:[%s0 + $0x148] sm:$0xff]
  %v62 = vld [vmem:[%s1] sm:$0xff]
  %v63 = vld [vmem:[%s1 + $0x8] sm:$0xff]
  %v64 = vld [vmem:[%s1 + $0x10] sm:$0xff]
  %v65 = vld [vmem:[%s1 + $0x18] sm:$0xff]
  %v66 = vld [vmem:[%s1 + $0x20] sm:$0xff]
  %v67 = vld [vmem:[%s1 + $0x28] sm:$0xff]
  %v68 = vld [vmem:[%s1 + $0x30] sm:$0xff]
  %v69 = vld [vmem:[%s1 + $0x38] sm:$0xff]
  %v70 = vld [vmem:[%s1 + $0x40] sm:$0xff]
  %v71 = vld [vmem:[%s1 + $0x48] sm:$0xff]
  %v72 = vld [vmem:[%s1 + $0x50] sm:$0xff]
  %v73 = vld [vmem:[%s1 + $0x58] sm:$0xff]
  %v74 = vld [vmem:[%s1 + $0x60] sm:$0xff]
  %v75 = vld [vmem:[%s1 + $0x68] sm:$0xff]
  %v76 = vld [vmem:[%s1 + $0x70] sm:$0xff]
  %v77 = vld [vmem:[%s1 + $0x78] sm:$0xff]
  %v78 = vld [vmem:[%s1 + $0x80] sm:$0xff]
  %v79 = vld [vmem:[%s1 + $0x88] sm:$0xff]
  %v80 = vld [vmem:[%s1 + $0x90] sm:$0xff]
  %v81 = vld [vmem:[%s1 + $0x98] sm:$0xff]
  %v82 = vld [vmem:[%s1 + $0xa0] sm:$0xff]
  %v83 = vld [vmem:[%s1 + $0xa8] sm:$0xff]
  %v84 = vld [vmem:[%s1 + $0xb0] sm:$0xff]
  %v85 = vld [vmem:[%s1 + $0xb8] sm:$0xff]
  %v86 = vld [vmem:[%s1 + $0xc0] sm:$0xff]
  %v87 = vld [vmem:[%s1 + $0xc8] sm:$0xff]
  %v88 = vld [vmem:[%s1 + $0xd0] sm:$0xff]
  %v89 = vld [vmem:[%s1 + $0xd8] sm:$0xff]
  %v90 = vld [vmem:[%s1 + $0xe0] sm:$0xff]
  %v91 = vld [vmem:[%s1 + $0xe8] sm:$0xff]
  %v92 = vld [vmem:[%s1 + $0xf0] sm:$0xff]
  %v93 = vld [vmem:[%s1 + $0xf8] sm:$0xff]
  %v94 = vld [vmem:[%s1 + $0x100] sm:$0xff]
  %v95 = vld [vmem:[%s1 + $0x108] sm:$0xff]
  %v96 = vld [vmem:[%s1 + $0x110] sm:$0xff]
  %v97 = vld [vmem:[%s1 + $0x118] sm:$0xff]
  %v98 = vld [vmem:[%s1 + $0x120] sm:$0xff]
  %v99 = vld [vmem:[%s1 + $0x128] sm:$0xff]
  %v100 = vld [vmem:[%s1 + $0x130] sm:$0xff]
  %v101 = vld [vmem:[%s1 + $0x138] sm:$0xff]
  %v102 = vld [vmem:[%s1 + $0x140] sm:$0xff]
  %v103 = vld [vmem:[%s1 + $0x148] sm:$0xff]
  %v104 = vld [vmem:[%s1 + $0x150] sm:$0xff]
  %v105 = vld [vmem:[%s1 + $0x158] sm:$0xff]
  %v106 = vld [vmem:[%s1 + $0x160] sm:$0xff]
  %v107 = vld [vmem:[%s1 + $0x168] sm:$0xff]
  %v108 = vld [vmem:[%s1 + $0x170] sm:$0xff]
  %v109 = vld [vmem:[%s1 + $0x178] sm:$0xff]
  %v110 = vld [vmem:[%s2] sm:$0xff]
  %v111 = vld [vmem:[%s2 + $0x8] sm:$0xff]
  %v112 = vld [vmem:[%s2 + $0x10] sm:$0xff]
  %v113 = vld [vmem:[%s2 + $0x18] sm:$0xff]
  %v114 = vld [vmem:[%s2 + $0x20] sm:$0xff]
  %v115 = vld [vmem:[%s2 + $0x28] sm:$0xff]
  %v116 = vld [vmem:[%s2 + $0x30] sm:$0xff]
  %v117 = vld [vmem:[%s2 + $0x38] sm:$0xff]
  %v118 = vld [vmem:[%s2 + $0x40] sm:$0xff]
  %v119 = vld [vmem:[%s2 + $0x48] sm:$0xff]
  %v120 = vld [vmem:[%s2 + $0x50] sm:$0xff]
  %v121 = vld [vmem:[%s2 + $0x58] sm:$0xff]
  %v122 = vld [vmem:[%s2 + $0x60] sm:$0xff]
  %v123 = vld [vmem:[%s2 + $0x68] sm:$0xff]
  %v124 = vld [vmem:[%s2 + $0x70] sm:$0xff]
  %v125 = vld [vmem:[%s2 + $0x78] sm:$0xff]
  %vm126 = vcmask 654336
  %v128 = vsel %vm126, %v64, 0
  %v131 = vsel %vm126, %v67, 0
  %v134 = vsel %vm126, %v70, 0
  %v137 = vsel %vm126, %v73, 0
  %v140 = vsel %vm126, %v76, 0
  %v143 = vsel %vm126, %v79, 0
  %v146 = vsel %vm126, %v82, 0
  %v149 = vsel %vm126, %v85, 0
  %v152 = vsel %vm126, %v88, 0
  %v155 = vsel %vm126, %v91, 0
  %v158 = vsel %vm126, %v94, 0
  %v161 = vsel %vm126, %v97, 0
  %v164 = vsel %vm126, %v100, 0
  %v167 = vsel %vm126, %v103, 0
  %v170 = vsel %vm126, %v106, 0
  %v173 = vsel %vm126, %v109, 0
  %175 = vmatprep.subr.mxu0 0.0
  %176 = vmatpush1.msra.mxu0 %v35
  %177 = vmatprep.subr.mxu0 0.0
  %178 = vmatpush1.msra.mxu0 %v34
  %179 = vmatprep.subr.mxu0 0.0
  %180 = vmatpush1.msra.mxu0 %v33
  %181 = vmatprep.subr.mxu0 0.0
  %182 = vmatpush1.msra.mxu0 %v32
  %183 = vmatprep.subr.mxu0 0.0
  %184 = vmatpush1.msra.mxu0 %v31
  %185 = vmatprep.subr.mxu0 0.0
  %186 = vmatpush1.msra.mxu0 %v30
  %187 = vmatprep.subr.mxu0 0.0
  %188 = vmatpush1.msra.mxu0 %v29
  %189 = vmatprep.subr.mxu0 0.0
  %190 = vmatpush1.msra.mxu0 %v28
  %191 = vmatprep.subr.mxu0 0.0
  %192 = vmatpush1.msra.mxu0 %v27
  %193 = vmatprep.subr.mxu0 0.0
  %194 = vmatpush1.msra.mxu0 %v26
  %195 = vmatprep.subr.mxu0 0.0
  %196 = vmatpush1.msra.mxu0 %v25
  %197 = vmatprep.subr.mxu0 0.0
  %198 = vmatpush1.msra.mxu0 %v24
  %199 = vmatprep.subr.mxu0 0.0
  %200 = vmatpush1.msra.mxu0 %v23
  %201 = vmatprep.subr.mxu0 0.0
  %202 = vmatpush1.msra.mxu0 %v22
  %203 = vmatprep.subr.mxu0 0.0
  %204 = vmatpush1.msra.mxu0 %v21
  %205 = vmatprep.subr.mxu0 0.0
  %206 = vmatpush1.msra.mxu0 %v20
  %207 = vmatprep.subr.mxu0 0.0
  %208 = vmatpush2.msra.mxu0 %v51
  %209 = vmatprep.subr.mxu0 0.0
  %210 = vmatpush2.msra.mxu0 %v50
  %211 = vmatprep.subr.mxu0 0.0
  %212 = vmatpush2.msra.mxu0 %v49
  %213 = vmatprep.subr.mxu0 0.0
  %214 = vmatpush2.msra.mxu0 %v48
  %215 = vmatprep.subr.mxu0 0.0
  %216 = vmatpush2.msra.mxu0 %v47
  %217 = vmatprep.subr.mxu0 0.0
  %218 = vmatpush2.msra.mxu0 %v46
  %219 = vmatprep.subr.mxu0 0.0
  %220 = vmatpush2.msra.mxu0 %v45
  %221 = vmatprep.subr.mxu0 0.0
  %222 = vmatpush2.msra.mxu0 %v44
  %223 = vmatprep.subr.mxu0 0.0
  %224 = vmatpush2.msra.mxu0 %v43
  %225 = vmatprep.subr.mxu0 0.0
  %226 = vmatpush2.msra.mxu0 %v42
  %227 = vmatprep.subr.mxu0 0.0
  %228 = vmatpush2.msra.mxu0 %v41
  %229 = vmatprep.subr.mxu0 0.0
  %230 = vmatpush2.msra.mxu0 %v40
  %231 = vmatprep.subr.mxu0 0.0
  %232 = vmatpush2.msra.mxu0 %v39
  %233 = vmatprep.subr.mxu0 0.0
  %234 = vmatpush2.msra.mxu0 %v38
  %235 = vmatprep.subr.mxu0 0.0
  %236 = vmatpush2.msra.mxu0 %v37
  %237 = vmatprep.subr.mxu0 0.0
  %238 = vmatpush2.msra.mxu0 %v36
  %239 = vmatprep.mubr.f32.mxu0 %v63
  %240 = vmatmul.mubr.f32.gmra.mxu0 %v62
  %v241 = vpop.f32.mrf.mxu0
  %v242 = vadd.f32 %v110, %v241
  %v243 = vpop.f32.mrf.mxu0
  %244 = vmatprep.mubr.f32.mxu0 %v66
  %245 = vmatmul.mubr.f32.gmra.mxu0 %v65
  %v246 = vpop.f32.mrf.mxu0
  %v247 = vadd.f32 %v111, %v246
  %v248 = vpop.f32.mrf.mxu0
  %249 = vmatprep.mubr.f32.mxu0 %v69
  %250 = vmatmul.mubr.f32.gmra.mxu0 %v68
  %v251 = vpop.f32.mrf.mxu0
  %v252 = vadd.f32 %v112, %v251
  %v253 = vpop.f32.mrf.mxu0
  %254 = vmatprep.mubr.f32.mxu0 %v72
  %255 = vmatmul.mubr.f32.gmra.mxu0 %v71
  %v256 = vpop.f32.mrf.mxu0
  %v257 = vadd.f32 %v113, %v256
  %v258 = vpop.f32.mrf.mxu0
  %259 = vmatprep.mubr.f32.mxu0 %v75
  %260 = vmatmul.mubr.f32.gmra.mxu0 %v74
  %v261 = vpop.f32.mrf.mxu0
  %v262 = vadd.f32 %v114, %v261
  %v263 = vpop.f32.mrf.mxu0
  %264 = vmatprep.mubr.f32.mxu0 %v78
  %265 = vmatmul.mubr.f32.gmra.mxu0 %v77
  %v266 = vpop.f32.mrf.mxu0
  %v267 = vadd.f32 %v115, %v266
  %v268 = vpop.f32.mrf.mxu0
  %269 = vmatprep.mubr.f32.mxu0 %v81
  %270 = vmatmul.mubr.f32.gmra.mxu0 %v80
  %v271 = vpop.f32.mrf.mxu0
  %v272 = vadd.f32 %v116, %v271
  %v273 = vpop.f32.mrf.mxu0
  %274 = vmatprep.mubr.f32.mxu0 %v84
  %275 = vmatmul.mubr.f32.gmra.mxu0 %v83
  %v276 = vpop.f32.mrf.mxu0
  %v277 = vadd.f32 %v117, %v276
  %v278 = vpop.f32.mrf.mxu0
  %279 = vmatprep.mubr.f32.mxu0 %v87
  %280 = vmatmul.mubr.f32.gmra.mxu0 %v86
  %v281 = vpop.f32.mrf.mxu0
  %v282 = vadd.f32 %v118, %v281
  %v283 = vpop.f32.mrf.mxu0
  %284 = vmatprep.mubr.f32.mxu0 %v90
  %285 = vmatmul.mubr.f32.gmra.mxu0 %v89
  %v286 = vpop.f32.mrf.mxu0
  %v287 = vadd.f32 %v119, %v286
  %v288 = vpop.f32.mrf.mxu0
  %289 = vmatprep.mubr.f32.mxu0 %v93
  %290 = vmatmul.mubr.f32.gmra.mxu0 %v92
  %v291 = vpop.f32.mrf.mxu0
  %v292 = vadd.f32 %v120, %v291
  %v293 = vpop.f32.mrf.mxu0
  %294 = vmatprep.mubr.f32.mxu0 %v96
  %295 = vmatmul.mubr.f32.gmra.mxu0 %v95
  %v296 = vpop.f32.mrf.mxu0
  %v297 = vadd.f32 %v121, %v296
  %v298 = vpop.f32.mrf.mxu0
  %299 = vmatprep.mubr.f32.mxu0 %v99
  %300 = vmatmul.mubr.f32.gmra.mxu0 %v98
  %v301 = vpop.f32.mrf.mxu0
  %v302 = vadd.f32 %v122, %v301
  %v303 = vpop.f32.mrf.mxu0
  %304 = vmatprep.mubr.f32.mxu0 %v102
  %305 = vmatmul.mubr.f32.gmra.mxu0 %v101
  %v306 = vpop.f32.mrf.mxu0
  %v307 = vadd.f32 %v123, %v306
  %v308 = vpop.f32.mrf.mxu0
  %309 = vmatprep.mubr.f32.mxu0 %v105
  %310 = vmatmul.mubr.f32.gmra.mxu0 %v104
  %v311 = vpop.f32.mrf.mxu0
  %v312 = vadd.f32 %v124, %v311
  %v313 = vpop.f32.mrf.mxu0
  %314 = vmatprep.mubr.f32.mxu0 %v108
  %315 = vmatmul.mubr.f32.gmra.mxu0 %v107
  %v316 = vpop.f32.mrf.mxu0
  %v317 = vadd.f32 %v125, %v316
  %v318 = vpop.f32.mrf.mxu0
  %319 = vdwg.mxu0
  %320 = vmatprep.subr.mxu0 0.0
  %321 = vmatpush1.msra.mxu0 0.0
  %322 = vmatprep.subr.mxu0 0.0
  %323 = vmatpush1.msra.mxu0 0.0
  %324 = vmatprep.subr.mxu0 0.0
  %325 = vmatpush1.msra.mxu0 0.0
  %326 = vmatprep.subr.mxu0 0.0
  %327 = vmatpush1.msra.mxu0 0.0
  %328 = vmatprep.subr.mxu0 0.0
  %329 = vmatpush1.msra.mxu0 0.0
  %330 = vmatprep.subr.mxu0 0.0
  %331 = vmatpush1.msra.mxu0 0.0
  %332 = vmatprep.subr.mxu0 0.0
  %333 = vmatpush1.msra.mxu0 %v61
  %334 = vmatprep.subr.mxu0 0.0
  %335 = vmatpush1.msra.mxu0 %v60
  %336 = vmatprep.subr.mxu0 0.0
  %337 = vmatpush1.msra.mxu0 %v59
  %338 = vmatprep.subr.mxu0 0.0
  %339 = vmatpush1.msra.mxu0 %v58
  %340 = vmatprep.subr.mxu0 0.0
  %341 = vmatpush1.msra.mxu0 %v57
  %342 = vmatprep.subr.mxu0 0.0
  %343 = vmatpush1.msra.mxu0 %v56
  %344 = vmatprep.subr.mxu0 0.0
  %345 = vmatpush1.msra.mxu0 %v55
  %346 = vmatprep.subr.mxu0 0.0
  %347 = vmatpush1.msra.mxu0 %v54
  %348 = vmatprep.subr.mxu0 0.0
  %349 = vmatpush1.msra.mxu0 %v53
  %350 = vmatprep.subr.mxu0 0.0
  %351 = vmatpush1.msra.mxu0 %v52
  %352 = vmatprep.subr.mxu0 0.0
  %353 = vmatpush2.msra.mxu0 0.0
  %354 = vmatprep.subr.mxu0 0.0
  %355 = vmatpush2.msra.mxu0 0.0
  %356 = vmatprep.subr.mxu0 0.0
  %357 = vmatpush2.msra.mxu0 0.0
  %358 = vmatprep.subr.mxu0 0.0
  %359 = vmatpush2.msra.mxu0 0.0
  %360 = vmatprep.subr.mxu0 0.0
  %361 = vmatpush2.msra.mxu0 0.0
  %362 = vmatprep.subr.mxu0 0.0
  %363 = vmatpush2.msra.mxu0 0.0
  %364 = vmatprep.subr.mxu0 0.0
  %365 = vmatpush2.msra.mxu0 0.0
  %366 = vmatprep.subr.mxu0 0.0
  %367 = vmatpush2.msra.mxu0 0.0
  %368 = vmatprep.subr.mxu0 0.0
  %369 = vmatpush2.msra.mxu0 0.0
  %370 = vmatprep.subr.mxu0 0.0
  %371 = vmatpush2.msra.mxu0 0.0
  %372 = vmatprep.subr.mxu0 0.0
  %373 = vmatpush2.msra.mxu0 0.0
  %374 = vmatprep.subr.mxu0 0.0
  %375 = vmatpush2.msra.mxu0 0.0
  %376 = vmatprep.subr.mxu0 0.0
  %377 = vmatpush2.msra.mxu0 0.0
  %378 = vmatprep.subr.mxu0 0.0
  %379 = vmatpush2.msra.mxu0 0.0
  %380 = vmatprep.subr.mxu0 0.0
  %381 = vmatpush2.msra.mxu0 0.0
  %382 = vmatprep.subr.mxu0 0.0
  %383 = vmatpush2.msra.mxu0 0.0
  %384 = vmatprep.mubr.f32.mxu0 0.0
  %385 = vmatmul.mubr.f32.gmra.mxu0 %v128
  %v386 = vpop.f32.mrf.mxu0
  %v387 = vadd.f32 %v242, %v386
  %v388 = vpop.f32.mrf.mxu0
  %389 = vmatprep.mubr.f32.mxu0 0.0
  %390 = vmatmul.mubr.f32.gmra.mxu0 %v131
  %v391 = vpop.f32.mrf.mxu0
  %v392 = vadd.f32 %v247, %v391
  %v393 = vpop.f32.mrf.mxu0
  %394 = vmatprep.mubr.f32.mxu0 0.0
  %395 = vmatmul.mubr.f32.gmra.mxu0 %v134
  %v396 = vpop.f32.mrf.mxu0
  %v397 = vadd.f32 %v252, %v396
  %v398 = vpop.f32.mrf.mxu0
  %399 = vmatprep.mubr.f32.mxu0 0.0
  %400 = vmatmul.mubr.f32.gmra.mxu0 %v137
  %v401 = vpop.f32.mrf.mxu0
  %v402 = vadd.f32 %v257, %v401
  %v403 = vpop.f32.mrf.mxu0
  %404 = vmatprep.mubr.f32.mxu0 0.0
  %405 = vmatmul.mubr.f32.gmra.mxu0 %v140
  %v406 = vpop.f32.mrf.mxu0
  %v407 = vadd.f32 %v262, %v406
  %v408 = vpop.f32.mrf.mxu0
  %409 = vmatprep.mubr.f32.mxu0 0.0
  %410 = vmatmul.mubr.f32.gmra.mxu0 %v143
  %v411 = vpop.f32.mrf.mxu0
  %v412 = vadd.f32 %v267, %v411
  %v413 = vpop.f32.mrf.mxu0
  %414 = vmatprep.mubr.f32.mxu0 0.0
  %415 = vmatmul.mubr.f32.gmra.mxu0 %v146
  %v416 = vpop.f32.mrf.mxu0
  %v417 = vadd.f32 %v272, %v416
  %v418 = vpop.f32.mrf.mxu0
  %419 = vmatprep.mubr.f32.mxu0 0.0
  %420 = vmatmul.mubr.f32.gmra.mxu0 %v149
  %v421 = vpop.f32.mrf.mxu0
  %v422 = vadd.f32 %v277, %v421
  %v423 = vpop.f32.mrf.mxu0
  %424 = vmatprep.mubr.f32.mxu0 0.0
  %425 = vmatmul.mubr.f32.gmra.mxu0 %v152
  %v426 = vpop.f32.mrf.mxu0
  %v427 = vadd.f32 %v282, %v426
  %v428 = vpop.f32.mrf.mxu0
  %429 = vmatprep.mubr.f32.mxu0 0.0
  %430 = vmatmul.mubr.f32.gmra.mxu0 %v155
  %v431 = vpop.f32.mrf.mxu0
  %v432 = vadd.f32 %v287, %v431
  %v433 = vpop.f32.mrf.mxu0
  %434 = vmatprep.mubr.f32.mxu0 0.0
  %435 = vmatmul.mubr.f32.gmra.mxu0 %v158
  %v436 = vpop.f32.mrf.mxu0
  %v437 = vadd.f32 %v292, %v436
  %v438 = vpop.f32.mrf.mxu0
  %439 = vmatprep.mubr.f32.mxu0 0.0
  %440 = vmatmul.mubr.f32.gmra.mxu0 %v161
  %v441 = vpop.f32.mrf.mxu0
  %v442 = vadd.f32 %v297, %v441
  %v443 = vpop.f32.mrf.mxu0
  %444 = vmatprep.mubr.f32.mxu0 0.0
  %445 = vmatmul.mubr.f32.gmra.mxu0 %v164
  %v446 = vpop.f32.mrf.mxu0
  %v447 = vadd.f32 %v302, %v446
  %v448 = vpop.f32.mrf.mxu0
  %449 = vmatprep.mubr.f32.mxu0 0.0
  %450 = vmatmul.mubr.f32.gmra.mxu0 %v167
  %v451 = vpop.f32.mrf.mxu0
  %v452 = vadd.f32 %v307, %v451
  %v453 = vpop.f32.mrf.mxu0
  %454 = vmatprep.mubr.f32.mxu0 0.0
  %455 = vmatmul.mubr.f32.gmra.mxu0 %v170
  %v456 = vpop.f32.mrf.mxu0
  %v457 = vadd.f32 %v312, %v456
  %v458 = vpop.f32.mrf.mxu0
  %459 = vmatprep.mubr.f32.mxu0 0.0
  %460 = vmatmul.mubr.f32.gmra.mxu0 %v173
  %v461 = vpop.f32.mrf.mxu0
  %v462 = vadd.f32 %v317, %v461
  %v463 = vpop.f32.mrf.mxu0
  %464 = vdwg.mxu0
  %v465 = vmax.f32 %v387, 0.0
  %v466 = vmax.f32 %v392, 0.0
  %v467 = vmax.f32 %v397, 0.0
  %v468 = vmax.f32 %v402, 0.0
  %v469 = vmax.f32 %v407, 0.0
  %v470 = vmax.f32 %v412, 0.0
  %v471 = vmax.f32 %v417, 0.0
  %v472 = vmax.f32 %v422, 0.0
  %v473 = vmax.f32 %v427, 0.0
  %v474 = vmax.f32 %v432, 0.0
  %v475 = vmax.f32 %v437, 0.0
  %v476 = vmax.f32 %v442, 0.0
  %v477 = vmax.f32 %v447, 0.0
  %v478 = vmax.f32 %v452, 0.0
  %v479 = vmax.f32 %v457, 0.0
  %v480 = vmax.f32 %v462, 0.0
  %v481 = vld [vmem:[%s3] sm:$0xff]
  %v482 = vld [vmem:[%s3 + $0x8] sm:$0xff]
  %v483 = vld [vmem:[%s3 + $0x10] sm:$0xff]
  %v484 = vld [vmem:[%s3 + $0x18] sm:$0xff]
  %v485 = vld [vmem:[%s3 + $0x20] sm:$0xff]
  %v486 = vld [vmem:[%s3 + $0x28] sm:$0xff]
  %v487 = vld [vmem:[%s3 + $0x30] sm:$0xff]
  %v488 = vld [vmem:[%s3 + $0x38] sm:$0xff]
  %v489 = vld [vmem:[%s3 + $0x40] sm:$0xff]
  %v490 = vld [vmem:[%s3 + $0x48] sm:$0xff]
  %v491 = vld [vmem:[%s3 + $0x50] sm:$0xff]
  %v492 = vld [vmem:[%s3 + $0x58] sm:$0xff]
  %v493 = vld [vmem:[%s3 + $0x60] sm:$0xff]
  %v494 = vld [vmem:[%s3 + $0x68] sm:$0xff]
  %v495 = vld [vmem:[%s3 + $0x70] sm:$0xff]
  %v496 = vld [vmem:[%s3 + $0x78] sm:$0xff]
  %v497 = vld [vmem:[%s3 + $0x80] sm:$0xff]
  %v498 = vld [vmem:[%s3 + $0x88] sm:$0xff]
  %v499 = vld [vmem:[%s3 + $0x90] sm:$0xff]
  %v500 = vld [vmem:[%s3 + $0x98] sm:$0xff]
  %v501 = vld [vmem:[%s3 + $0xa0] sm:$0xff]
  %v502 = vld [vmem:[%s3 + $0xa8] sm:$0xff]
  %v503 = vld [vmem:[%s3 + $0xb0] sm:$0xff]
  %v504 = vld [vmem:[%s3 + $0xb8] sm:$0xff]
  %v505 = vld [vmem:[%s3 + $0xc0] sm:$0xff]
  %v506 = vld [vmem:[%s3 + $0xc8] sm:$0xff]
  %v507 = vld [vmem:[%s3 + $0xd0] sm:$0xff]
  %v508 = vld [vmem:[%s3 + $0xd8] sm:$0xff]
  %v509 = vld [vmem:[%s3 + $0xe0] sm:$0xff]
  %v510 = vld [vmem:[%s3 + $0xe8] sm:$0xff]
  %v511 = vld [vmem:[%s3 + $0xf0] sm:$0xff]
  %v512 = vld [vmem:[%s3 + $0xf8] sm:$0xff]
  %v513 = vld [vmem:[%s3 + $0x100] sm:$0xff]
  %v514 = vld [vmem:[%s3 + $0x108] sm:$0xff]
  %v515 = vld [vmem:[%s3 + $0x110] sm:$0xff]
  %v516 = vld [vmem:[%s3 + $0x118] sm:$0xff]
  %v517 = vld [vmem:[%s3 + $0x120] sm:$0xff]
  %v518 = vld [vmem:[%s3 + $0x128] sm:$0xff]
  %v519 = vld [vmem:[%s3 + $0x130] sm:$0xff]
  %v520 = vld [vmem:[%s3 + $0x138] sm:$0xff]
  %v521 = vld [vmem:[%s3 + $0x140] sm:$0xff]
  %v522 = vld [vmem:[%s3 + $0x148] sm:$0xff]
  %v523 = vld [vmem:[%s4] sm:$0xff]
  %v524 = vld [vmem:[%s4 + $0x8] sm:$0xff]
  %v525 = vld [vmem:[%s4 + $0x10] sm:$0xff]
  %v526 = vld [vmem:[%s4 + $0x18] sm:$0xff]
  %v527 = vld [vmem:[%s4 + $0x20] sm:$0xff]
  %v528 = vld [vmem:[%s4 + $0x28] sm:$0xff]
  %v529 = vld [vmem:[%s4 + $0x30] sm:$0xff]
  %v530 = vld [vmem:[%s4 + $0x38] sm:$0xff]
  %v531 = vld [vmem:[%s4 + $0x40] sm:$0xff]
  %v532 = vld [vmem:[%s4 + $0x48] sm:$0xff]
  %v533 = vld [vmem:[%s4 + $0x50] sm:$0xff]
  %v534 = vld [vmem:[%s4 + $0x58] sm:$0xff]
  %v535 = vld [vmem:[%s4 + $0x60] sm:$0xff]
  %v536 = vld [vmem:[%s4 + $0x68] sm:$0xff]
  %v537 = vld [vmem:[%s4 + $0x70] sm:$0xff]
  %v538 = vld [vmem:[%s4 + $0x78] sm:$0xff]
  %v539 = vld [vmem:[%s4 + $0x80] sm:$0xff]
  %v540 = vld [vmem:[%s4 + $0x88] sm:$0xff]
  %v541 = vld [vmem:[%s4 + $0x90] sm:$0xff]
  %v542 = vld [vmem:[%s4 + $0x98] sm:$0xff]
  %v543 = vld [vmem:[%s4 + $0xa0] sm:$0xff]
  %v544 = vld [vmem:[%s4 + $0xa8] sm:$0xff]
  %v545 = vld [vmem:[%s4 + $0xb0] sm:$0xff]
  %v546 = vld [vmem:[%s4 + $0xb8] sm:$0xff]
  %v547 = vld [vmem:[%s4 + $0xc0] sm:$0xff]
  %v548 = vld [vmem:[%s4 + $0xc8] sm:$0xff]
  %v549 = vld [vmem:[%s4 + $0xd0] sm:$0xff]
  %v550 = vld [vmem:[%s4 + $0xd8] sm:$0xff]
  %v551 = vld [vmem:[%s4 + $0xe0] sm:$0xff]
  %v552 = vld [vmem:[%s4 + $0xe8] sm:$0xff]
  %v553 = vld [vmem:[%s4 + $0xf0] sm:$0xff]
  %v554 = vld [vmem:[%s4 + $0xf8] sm:$0xff]
  %v555 = vld [vmem:[%s4 + $0x100] sm:$0xff]
  %v556 = vld [vmem:[%s4 + $0x108] sm:$0xff]
  %v557 = vld [vmem:[%s4 + $0x110] sm:$0xff]
  %v558 = vld [vmem:[%s4 + $0x118] sm:$0xff]
  %v559 = vld [vmem:[%s4 + $0x120] sm:$0xff]
  %v560 = vld [vmem:[%s4 + $0x128] sm:$0xff]
  %v561 = vld [vmem:[%s4 + $0x130] sm:$0xff]
  %v562 = vld [vmem:[%s4 + $0x138] sm:$0xff]
  %v563 = vld [vmem:[%s4 + $0x140] sm:$0xff]
  %v564 = vld [vmem:[%s4 + $0x148] sm:$0xff]
  %565 = vmatprep.subr.mxu0 0.0
  %566 = vmatpush1.msra.mxu0 %v480
  %567 = vmatprep.subr.mxu0 0.0
  %568 = vmatpush1.msra.mxu0 %v479
  %569 = vmatprep.subr.mxu0 0.0
  %570 = vmatpush1.msra.mxu0 %v478
  %571 = vmatprep.subr.mxu0 0.0
  %572 = vmatpush1.msra.mxu0 %v477
  %573 = vmatprep.subr.mxu0 0.0
  %574 = vmatpush1.msra.mxu0 %v476
  %575 = vmatprep.subr.mxu0 0.0
  %576 = vmatpush1.msra.mxu0 %v475
  %577 = vmatprep.subr.mxu0 0.0
  %578 = vmatpush1.msra.mxu0 %v474
  %579 = vmatprep.subr.mxu0 0.0
  %580 = vmatpush1.msra.mxu0 %v473
  %581 = vmatprep.subr.mxu0 0.0
  %582 = vmatpush1.msra.mxu0 %v472
  %583 = vmatprep.subr.mxu0 0.0
  %584 = vmatpush1.msra.mxu0 %v471
  %585 = vmatprep.subr.mxu0 0.0
  %586 = vmatpush1.msra.mxu0 %v470
  %587 = vmatprep.subr.mxu0 0.0
  %588 = vmatpush1.msra.mxu0 %v469
  %589 = vmatprep.subr.mxu0 0.0
  %590 = vmatpush1.msra.mxu0 %v468
  %591 = vmatprep.subr.mxu0 0.0
  %592 = vmatpush1.msra.mxu0 %v467
  %593 = vmatprep.subr.mxu0 0.0
  %594 = vmatpush1.msra.mxu0 %v466
  %595 = vmatprep.subr.mxu0 0.0
  %596 = vmatpush1.msra.mxu0 %v465
  %597 = vmatprep.subr.mxu0 0.0
  %598 = vmatpush2.msra.mxu0 0.0
  %599 = vmatprep.subr.mxu0 0.0
  %600 = vmatpush2.msra.mxu0 0.0
  %601 = vmatprep.subr.mxu0 0.0
  %602 = vmatpush2.msra.mxu0 0.0
  %603 = vmatprep.subr.mxu0 0.0
  %604 = vmatpush2.msra.mxu0 0.0
  %605 = vmatprep.subr.mxu0 0.0
  %606 = vmatpush2.msra.mxu0 0.0
  %607 = vmatprep.subr.mxu0 0.0
  %608 = vmatpush2.msra.mxu0 0.0
  %609 = vmatprep.subr.mxu0 0.0
  %610 = vmatpush2.msra.mxu0 0.0
  %611 = vmatprep.subr.mxu0 0.0
  %612 = vmatpush2.msra.mxu0 0.0
  %613 = vmatprep.subr.mxu0 0.0
  %614 = vmatpush2.msra.mxu0 0.0
  %615 = vmatprep.subr.mxu0 0.0
  %616 = vmatpush2.msra.mxu0 0.0
  %617 = vmatprep.subr.mxu0 0.0
  %618 = vmatpush2.msra.mxu0 0.0
  %619 = vmatprep.subr.mxu0 0.0
  %620 = vmatpush2.msra.mxu0 0.0
  %621 = vmatprep.subr.mxu0 0.0
  %622 = vmatpush2.msra.mxu0 0.0
  %623 = vmatprep.subr.mxu0 0.0
  %624 = vmatpush2.msra.mxu0 0.0
  %625 = vmatprep.subr.mxu0 0.0
  %626 = vmatpush2.msra.mxu0 0.0
  %627 = vmatprep.subr.mxu0 0.0
  %628 = vmatpush2.msra.mxu0 0.0
  %629 = vmatprep.mubr.f32.mxu0 0.0
  %630 = vmatmul.mubr.f32.gmra.mxu0 %v481
  %v631 = vpop.f32.mrf.mxu0
  %v632 = vadd.f32 %v523, %v631
  %v633 = vpop.f32.mrf.mxu0
  %634 = vmatprep.mubr.f32.mxu0 0.0
  %635 = vmatmul.mubr.f32.gmra.mxu0 %v482
  %v636 = vpop.f32.mrf.mxu0
  %v637 = vadd.f32 %v524, %v636
  %v638 = vpop.f32.mrf.mxu0
  %639 = vmatprep.mubr.f32.mxu0 0.0
  %640 = vmatmul.mubr.f32.gmra.mxu0 %v483
  %v641 = vpop.f32.mrf.mxu0
  %v642 = vadd.f32 %v525, %v641
  %v643 = vpop.f32.mrf.mxu0
  %644 = vmatprep.mubr.f32.mxu0 0.0
  %645 = vmatmul.mubr.f32.gmra.mxu0 %v484
  %v646 = vpop.f32.mrf.mxu0
  %v647 = vadd.f32 %v526, %v646
  %v648 = vpop.f32.mrf.mxu0
  %649 = vmatprep.mubr.f32.mxu0 0.0
  %650 = vmatmul.mubr.f32.gmra.mxu0 %v485
  %v651 = vpop.f32.mrf.mxu0
  %v652 = vadd.f32 %v527, %v651
  %v653 = vpop.f32.mrf.mxu0
  %654 = vmatprep.mubr.f32.mxu0 0.0
  %655 = vmatmul.mubr.f32.gmra.mxu0 %v486
  %v656 = vpop.f32.mrf.mxu0
  %v657 = vadd.f32 %v528, %v656
  %v658 = vpop.f32.mrf.mxu0
  %659 = vmatprep.mubr.f32.mxu0 0.0
  %660 = vmatmul.mubr.f32.gmra.mxu0 %v487
  %v661 = vpop.f32.mrf.mxu0
  %v662 = vadd.f32 %v529, %v661
  %v663 = vpop.f32.mrf.mxu0
  %664 = vmatprep.mubr.f32.mxu0 0.0
  %665 = vmatmul.mubr.f32.gmra.mxu0 %v488
  %v666 = vpop.f32.mrf.mxu0
  %v667 = vadd.f32 %v530, %v666
  %v668 = vpop.f32.mrf.mxu0
  %669 = vmatprep.mubr.f32.mxu0 0.0
  %670 = vmatmul.mubr.f32.gmra.mxu0 %v489
  %v671 = vpop.f32.mrf.mxu0
  %v672 = vadd.f32 %v531, %v671
  %v673 = vpop.f32.mrf.mxu0
  %674 = vmatprep.mubr.f32.mxu0 0.0
  %675 = vmatmul.mubr.f32.gmra.mxu0 %v490
  %v676 = vpop.f32.mrf.mxu0
  %v677 = vadd.f32 %v532, %v676
  %v678 = vpop.f32.mrf.mxu0
  %679 = vmatprep.mubr.f32.mxu0 0.0
  %680 = vmatmul.mubr.f32.gmra.mxu0 %v491
  %v681 = vpop.f32.mrf.mxu0
  %v682 = vadd.f32 %v533, %v681
  %v683 = vpop.f32.mrf.mxu0
  %684 = vmatprep.mubr.f32.mxu0 0.0
  %685 = vmatmul.mubr.f32.gmra.mxu0 %v492
  %v686 = vpop.f32.mrf.mxu0
  %v687 = vadd.f32 %v534, %v686
  %v688 = vpop.f32.mrf.mxu0
  %689 = vmatprep.mubr.f32.mxu0 0.0
  %690 = vmatmul.mubr.f32.gmra.mxu0 %v493
  %v691 = vpop.f32.mrf.mxu0
  %v692 = vadd.f32 %v535, %v691
  %v693 = vpop.f32.mrf.mxu0
  %694 = vmatprep.mubr.f32.mxu0 0.0
  %695 = vmatmul.mubr.f32.gmra.mxu0 %v494
  %v696 = vpop.f32.mrf.mxu0
  %v697 = vadd.f32 %v536, %v696
  %v698 = vpop.f32.mrf.mxu0
  %699 = vmatprep.mubr.f32.mxu0 0.0
  %700 = vmatmul.mubr.f32.gmra.mxu0 %v495
  %v701 = vpop.f32.mrf.mxu0
  %v702 = vadd.f32 %v537, %v701
  %v703 = vpop.f32.mrf.mxu0
  %704 = vmatprep.mubr.f32.mxu0 0.0
  %705 = vmatmul.mubr.f32.gmra.mxu0 %v496
  %v706 = vpop.f32.mrf.mxu0
  %v707 = vadd.f32 %v538, %v706
  %v708 = vpop.f32.mrf.mxu0
  %709 = vmatprep.mubr.f32.mxu0 0.0
  %710 = vmatmul.mubr.f32.gmra.mxu0 %v497
  %v711 = vpop.f32.mrf.mxu0
  %v712 = vadd.f32 %v539, %v711
  %v713 = vpop.f32.mrf.mxu0
  %714 = vmatprep.mubr.f32.mxu0 0.0
  %715 = vmatmul.mubr.f32.gmra.mxu0 %v498
  %v716 = vpop.f32.mrf.mxu0
  %v717 = vadd.f32 %v540, %v716
  %v718 = vpop.f32.mrf.mxu0
  %719 = vmatprep.mubr.f32.mxu0 0.0
  %720 = vmatmul.mubr.f32.gmra.mxu0 %v499
  %v721 = vpop.f32.mrf.mxu0
  %v722 = vadd.f32 %v541, %v721
  %v723 = vpop.f32.mrf.mxu0
  %724 = vmatprep.mubr.f32.mxu0 0.0
  %725 = vmatmul.mubr.f32.gmra.mxu0 %v500
  %v726 = vpop.f32.mrf.mxu0
  %v727 = vadd.f32 %v542, %v726
  %v728 = vpop.f32.mrf.mxu0
  %729 = vmatprep.mubr.f32.mxu0 0.0
  %730 = vmatmul.mubr.f32.gmra.mxu0 %v501
  %v731 = vpop.f32.mrf.mxu0
  %v732 = vadd.f32 %v543, %v731
  %v733 = vpop.f32.mrf.mxu0
  %734 = vmatprep.mubr.f32.mxu0 0.0
  %735 = vmatmul.mubr.f32.gmra.mxu0 %v502
  %v736 = vpop.f32.mrf.mxu0
  %v737 = vadd.f32 %v544, %v736
  %v738 = vpop.f32.mrf.mxu0
  %739 = vmatprep.mubr.f32.mxu0 0.0
  %740 = vmatmul.mubr.f32.gmra.mxu0 %v503
  %v741 = vpop.f32.mrf.mxu0
  %v742 = vadd.f32 %v545, %v741
  %v743 = vpop.f32.mrf.mxu0
  %744 = vmatprep.mubr.f32.mxu0 0.0
  %745 = vmatmul.mubr.f32.gmra.mxu0 %v504
  %v746 = vpop.f32.mrf.mxu0
  %v747 = vadd.f32 %v546, %v746
  %v748 = vpop.f32.mrf.mxu0
  %749 = vmatprep.mubr.f32.mxu0 0.0
  %750 = vmatmul.mubr.f32.gmra.mxu0 %v505
  %v751 = vpop.f32.mrf.mxu0
  %v752 = vadd.f32 %v547, %v751
  %v753 = vpop.f32.mrf.mxu0
  %754 = vmatprep.mubr.f32.mxu0 0.0
  %755 = vmatmul.mubr.f32.gmra.mxu0 %v506
  %v756 = vpop.f32.mrf.mxu0
  %v757 = vadd.f32 %v548, %v756
  %v758 = vpop.f32.mrf.mxu0
  %759 = vmatprep.mubr.f32.mxu0 0.0
  %760 = vmatmul.mubr.f32.gmra.mxu0 %v507
  %v761 = vpop.f32.mrf.mxu0
  %v762 = vadd.f32 %v549, %v761
  %v763 = vpop.f32.mrf.mxu0
  %764 = vmatprep.mubr.f32.mxu0 0.0
  %765 = vmatmul.mubr.f32.gmra.mxu0 %v508
  %v766 = vpop.f32.mrf.mxu0
  %v767 = vadd.f32 %v550, %v766
  %v768 = vpop.f32.mrf.mxu0
  %769 = vmatprep.mubr.f32.mxu0 0.0
  %770 = vmatmul.mubr.f32.gmra.mxu0 %v509
  %v771 = vpop.f32.mrf.mxu0
  %v772 = vadd.f32 %v551, %v771
  %v773 = vpop.f32.mrf.mxu0
  %774 = vmatprep.mubr.f32.mxu0 0.0
  %775 = vmatmul.mubr.f32.gmra.mxu0 %v510
  %v776 = vpop.f32.mrf.mxu0
  %v777 = vadd.f32 %v552, %v776
  %v778 = vpop.f32.mrf.mxu0
  %779 = vmatprep.mubr.f32.mxu0 0.0
  %780 = vmatmul.mubr.f32.gmra.mxu0 %v511
  %v781 = vpop.f32.mrf.mxu0
  %v782 = vadd.f32 %v553, %v781
  %v783 = vpop.f32.mrf.mxu0
  %784 = vmatprep.mubr.f32.mxu0 0.0
  %785 = vmatmul.mubr.f32.gmra.mxu0 %v512
  %v786 = vpop.f32.mrf.mxu0
  %v787 = vadd.f32 %v554, %v786
  %v788 = vpop.f32.mrf.mxu0
  %789 = vmatprep.mubr.f32.mxu0 0.0
  %790 = vmatmul.mubr.f32.gmra.mxu0 %v513
  %v791 = vpop.f32.mrf.mxu0
  %v792 = vadd.f32 %v555, %v791
  %v793 = vpop.f32.mrf.mxu0
  %794 = vmatprep.mubr.f32.mxu0 0.0
  %795 = vmatmul.mubr.f32.gmra.mxu0 %v514
  %v796 = vpop.f32.mrf.mxu0
  %v797 = vadd.f32 %v556, %v796
  %v798 = vpop.f32.mrf.mxu0
  %799 = vmatprep.mubr.f32.mxu0 0.0
  %800 = vmatmul.mubr.f32.gmra.mxu0 %v515
  %v801 = vpop.f32.mrf.mxu0
  %v802 = vadd.f32 %v557, %v801
  %v803 = vpop.f32.mrf.mxu0
  %804 = vmatprep.mubr.f32.mxu0 0.0
  %805 = vmatmul.mubr.f32.gmra.mxu0 %v516
  %v806 = vpop.f32.mrf.mxu0
  %v807 = vadd.f32 %v558, %v806
  %v808 = vpop.f32.mrf.mxu0
  %809 = vmatprep.mubr.f32.mxu0 0.0
  %810 = vmatmul.mubr.f32.gmra.mxu0 %v517
  %v811 = vpop.f32.mrf.mxu0
  %v812 = vadd.f32 %v559, %v811
  %v813 = vpop.f32.mrf.mxu0
  %814 = vmatprep.mubr.f32.mxu0 0.0
  %815 = vmatmul.mubr.f32.gmra.mxu0 %v518
  %v816 = vpop.f32.mrf.mxu0
  %v817 = vadd.f32 %v560, %v816
  %v818 = vpop.f32.mrf.mxu0
  %819 = vmatprep.mubr.f32.mxu0 0.0
  %820 = vmatmul.mubr.f32.gmra.mxu0 %v519
  %v821 = vpop.f32.mrf.mxu0
  %v822 = vadd.f32 %v561, %v821
  %v823 = vpop.f32.mrf.mxu0
  %824 = vmatprep.mubr.f32.mxu0 0.0
  %825 = vmatmul.mubr.f32.gmra.mxu0 %v520
  %v826 = vpop.f32.mrf.mxu0
  %v827 = vadd.f32 %v562, %v826
  %v828 = vpop.f32.mrf.mxu0
  %829 = vmatprep.mubr.f32.mxu0 0.0
  %830 = vmatmul.mubr.f32.gmra.mxu0 %v521
  %v831 = vpop.f32.mrf.mxu0
  %v832 = vadd.f32 %v563, %v831
  %v833 = vpop.f32.mrf.mxu0
  %834 = vmatprep.mubr.f32.mxu0 0.0
  %835 = vmatmul.mubr.f32.gmra.mxu0 %v522
  %v836 = vpop.f32.mrf.mxu0
  %v837 = vadd.f32 %v564, %v836
  %v838 = vpop.f32.mrf.mxu0
  %839 = vdwg.mxu0
  %vm840 = vcmask 7168
  %841 = vst.msk [vmem:[%s5] sm:$0xff] %vm840, %v632
  %842 = vst.msk [vmem:[%s5 + $0x8] sm:$0xff] %vm840, %v637
  %843 = vst.msk [vmem:[%s5 + $0x10] sm:$0xff] %vm840, %v642
  %844 = vst.msk [vmem:[%s5 + $0x18] sm:$0xff] %vm840, %v647
  %845 = vst.msk [vmem:[%s5 + $0x20] sm:$0xff] %vm840, %v652
  %846 = vst.msk [vmem:[%s5 + $0x28] sm:$0xff] %vm840, %v657
  %847 = vst.msk [vmem:[%s5 + $0x30] sm:$0xff] %vm840, %v662
  %848 = vst.msk [vmem:[%s5 + $0x38] sm:$0xff] %vm840, %v667
  %849 = vst.msk [vmem:[%s5 + $0x40] sm:$0xff] %vm840, %v672
  %850 = vst.msk [vmem:[%s5 + $0x48] sm:$0xff] %vm840, %v677
  %851 = vst.msk [vmem:[%s5 + $0x50] sm:$0xff] %vm840, %v682
  %852 = vst.msk [vmem:[%s5 + $0x58] sm:$0xff] %vm840, %v687
  %853 = vst.msk [vmem:[%s5 + $0x60] sm:$0xff] %vm840, %v692
  %854 = vst.msk [vmem:[%s5 + $0x68] sm:$0xff] %vm840, %v697
  %855 = vst.msk [vmem:[%s5 + $0x70] sm:$0xff] %vm840, %v702
  %856 = vst.msk [vmem:[%s5 + $0x78] sm:$0xff] %vm840, %v707
  %857 = vst.msk [vmem:[%s5 + $0x80] sm:$0xff] %vm840, %v712
  %858 = vst.msk [vmem:[%s5 + $0x88] sm:$0xff] %vm840, %v717
  %859 = vst.msk [vmem:[%s5 + $0x90] sm:$0xff] %vm840, %v722
  %860 = vst.msk [vmem:[%s5 + $0x98] sm:$0xff] %vm840, %v727
  %861 = vst.msk [vmem:[%s5 + $0xa0] sm:$0xff] %vm840, %v732
  %862 = vst.msk [vmem:[%s5 + $0xa8] sm:$0xff] %vm840, %v737
  %863 = vst.msk [vmem:[%s5 + $0xb0] sm:$0xff] %vm840, %v742
  %864 = vst.msk [vmem:[%s5 + $0xb8] sm:$0xff] %vm840, %v747
  %865 = vst.msk [vmem:[%s5 + $0xc0] sm:$0xff] %vm840, %v752
  %866 = vst.msk [vmem:[%s5 + $0xc8] sm:$0xff] %vm840, %v757
  %867 = vst.msk [vmem:[%s5 + $0xd0] sm:$0xff] %vm840, %v762
  %868 = vst.msk [vmem:[%s5 + $0xd8] sm:$0xff] %vm840, %v767
  %869 = vst.msk [vmem:[%s5 + $0xe0] sm:$0xff] %vm840, %v772
  %870 = vst.msk [vmem:[%s5 + $0xe8] sm:$0xff] %vm840, %v777
  %871 = vst.msk [vmem:[%s5 + $0xf0] sm:$0xff] %vm840, %v782
  %872 = vst.msk [vmem:[%s5 + $0xf8] sm:$0xff] %vm840, %v787
  %873 = vst.msk [vmem:[%s5 + $0x100] sm:$0xff] %vm840, %v792
  %874 = vst.msk [vmem:[%s5 + $0x108] sm:$0xff] %vm840, %v797
  %875 = vst.msk [vmem:[%s5 + $0x110] sm:$0xff] %vm840, %v802
  %876 = vst.msk [vmem:[%s5 + $0x118] sm:$0xff] %vm840, %v807
  %877 = vst.msk [vmem:[%s5 + $0x120] sm:$0xff] %vm840, %v812
  %878 = vst.msk [vmem:[%s5 + $0x128] sm:$0xff] %vm840, %v817
  %879 = vst.msk [vmem:[%s5 + $0x130] sm:$0xff] %vm840, %v822
  %880 = vst.msk [vmem:[%s5 + $0x138] sm:$0xff] %vm840, %v827
  %881 = vst.msk [vmem:[%s5 + $0x140] sm:$0xff] %vm840, %v832
  %882 = vst.msk [vmem:[%s5 + $0x148] sm:$0xff] %vm840, %v837
  // Predicated region
  $region22: #{tpu_custom_call.1} parent=0 // pred_check
    _
  $region23: #{tpu_custom_call.1} parent=0 // pred_check_branch
    %884 = sbr.rel (0) target = $region25
  $region24: #{tpu_custom_call.1} parent=0 // pred_region
    _
  $region25: #{tpu_custom_call.1} parent=0 // pred_fallthru
    _
  // Predicated region
  $region26: #{tpu_custom_call.1} parent=0 // pred_check
    _
  $region27: #{tpu_custom_call.1} parent=0 // pred_check_branch
    %886 = sbr.rel (0) target = $region29
  $region28: #{tpu_custom_call.1} parent=0 // pred_region
    _
  $region29: #{tpu_custom_call.1} parent=0 // pred_fallthru
    _

</llo_original>
